<compile_context>
chip_gen: v6e
topology: v6e:2x2x1
jax: 0.10.0
libtpu: 0.0.40
codegen_flags: <defaults>
</compile_context>

<pallas_src>
import enum
import functools
import math

import jax
import jax.numpy as jnp
import numpy as np
from jax.experimental import pallas as pl
from jax.experimental.pallas import tpu as pltpu

_LANE = 128


class VolumeDifferenceMethod(enum.Enum):
    SUM = 1
    THRESHOLD = 2
    WEIGHTED = 3
    WEIGHTED_THRESHOLDED = 4


def _cdiv(a, b):
    return -(-a // b)


def _round_up(x, m):
    return _cdiv(x, m) * m


def _padded_bytes_per_lane(C, dtype):
    """VMEM bytes per lane of one (C, TILE) input block (sublane padding incl.)."""
    itemsize = np.dtype(dtype).itemsize
    pack = max(1, 4 // itemsize)          # sub-32-bit dtypes pack along sublanes
    return _round_up(C, 8 * pack) * itemsize


def _vmem_capacity_bytes():
    try:
        return int(pltpu.get_tpu_info().vmem_capacity_bytes)
    except Exception:
        return 64 * 1024 * 1024           # conservative fallback (v7x per-core VMEM)


def _vd_kernel(p_ref, t_ref, psum_ref, tsum_ref, *,
               C, S, TL, ns, threshold,
               use_softmax, use_sigmoid, thresholded, weighted, has_ragged):
    u = pl.program_id(1)                  # spatial split (megacore) index
    s = pl.program_id(2)                  # spatial tile index within the split

    @pl.when(s == 0)
    def _():
        psum_ref[...] = jnp.zeros_like(psum_ref)
        tsum_ref[...] = jnp.zeros_like(tsum_ref)

    def accumulate(valid):
        p = p_ref[0].astype(jnp.float32)            # (C, TL)
        t = t_ref[0].astype(jnp.float32)            # (C, TL)
        if valid is not None:
            # Sanitize BEFORE exp: the ragged tail of the last tile is
            # uninitialized VMEM and may hold inf/NaN.
            p = jnp.where(valid, p, 0.0)
            t = jnp.where(valid, t, 0.0)

        # normalize_inputs: softmax over the channel axis (dim=1 in NCHW).
        if use_softmax:
            m = jnp.max(p, axis=0, keepdims=True)                   # (1, TL)
            e = jnp.exp(p - m)
            inv = 1.0 / jnp.sum(e, axis=0, keepdims=True)           # one divide / position
            p = e * inv
        elif use_sigmoid:
            p = 1.0 / (1.0 + jnp.exp(-p))

        if valid is not None:
            # softmax/sigmoid of a zeroed column is 1/C (not 0) -> re-mask output.
            p = jnp.where(valid, p, 0.0)

        p_sum_src = jnp.where(p > threshold, p, 0.0) if thresholded else p
        t_sum_src = t * p if weighted else t
        psum_ref[...] += jnp.sum(p_sum_src, axis=1, keepdims=True)[None, None]   # (1,1,C,1)
        tsum_ref[...] += jnp.sum(t_sum_src, axis=1, keepdims=True)[None, None]

    if not has_ragged:
        # Every tile is full and in-bounds: no masking anywhere.
        accumulate(None)
    else:
        base = (u * ns + s) * TL                    # global element offset of this tile
        is_full = base + TL <= S

        @pl.when(is_full)
        def _():                                    # interior tiles: zero mask cost
            accumulate(None)

        @pl.when(jnp.logical_not(is_full))
        def _():                                    # ragged/duplicate edge tiles
            pos = base + jax.lax.broadcasted_iota(jnp.int32, (C, TL), 1)
            accumulate(pos < S)


def volume_difference_loss(prediction, target,
                           method=VolumeDifferenceMethod.SUM,
                           threshold=0.5, weight=1.0,
                           sigmoid=False, softmax=True,
                           num_spatial_splits=2,
                           max_tile_lanes=256 * 1024):
    """prediction, target: [B, C, <spatial dims...>] (NCHW-style).

    Dtypes are passed through untouched (bf16/f32 predictions, bf16/uint8/f32
    targets); the kernel upcasts to f32 in VMEM.  Feeding narrower stored
    dtypes directly cuts HBM traffic; do NOT cast in the caller.
    """
    del weight  # unused by the reference forward()
    assert prediction.shape == target.shape

    B, C = int(prediction.shape[0]), int(prediction.shape[1])
    S = int(math.prod(prediction.shape[2:])) if prediction.ndim > 2 else 1

    # Contiguous views only -- no HBM copies.
    pred = prediction.reshape(B, C, S)
    tgt = target.reshape(B, C, S)

    nsplit = max(1, int(num_spatial_splits))

    # --- generation-aware VMEM budget -> spatial tile length (in lanes) ---
    vmem_cap = _vmem_capacity_bytes()
    vmem_limit = (vmem_cap * 3) // 4                    # scoped limit we request
    budget = (vmem_limit * 7) // 10                     # headroom for Mosaic temps
    per_lane = (2 * (_padded_bytes_per_lane(C, pred.dtype)        # double-buffered
                     + _padded_bytes_per_lane(C, tgt.dtype))      #   input blocks
                + 10 * 4 * _round_up(C, 8))                       # ~f32 tile temps
    tl = budget // per_lane
    tl = min(tl, int(max_tile_lanes))
    tl = max(_LANE, (tl // _LANE) * _LANE)
    # Don't use a bigger tile than needed; give each spatial split some work.
    tl = min(tl, _round_up(_cdiv(S, nsplit), _LANE))
    if S < _LANE:
        tl = S                     # block dim == full dim satisfies the lane rule
    TL = int(tl)

    n_tiles = _cdiv(S, TL)
    ns = _cdiv(n_tiles, nsplit)
    has_ragged = nsplit * ns * TL != S
    needs_clamp = nsplit * ns != n_tiles

    def in_map(b, u, s):
        t = u * ns + s
        if needs_clamp:
            # Keep every DMA in bounds; the kernel masks duplicate tiles to 0.
            t = jnp.minimum(t, n_tiles - 1)
        return (b, 0, t)

    out_map = lambda b, u, s: (b, u, 0, 0)

    thresholded = method in (VolumeDifferenceMethod.THRESHOLD,
                             VolumeDifferenceMethod.WEIGHTED_THRESHOLDED)
    weighted = method in (VolumeDifferenceMethod.WEIGHTED,
                          VolumeDifferenceMethod.WEIGHTED_THRESHOLDED)

    kernel = functools.partial(
        _vd_kernel, C=C, S=S, TL=TL, ns=ns, threshold=float(threshold),
        use_softmax=softmax, use_sigmoid=sigmoid,
        thresholded=thresholded, weighted=weighted, has_ragged=has_ragged)

    psum, tsum = pl.pallas_call(
        kernel,
        out_shape=(jax.ShapeDtypeStruct((B, nsplit, C, 1), jnp.float32),
                   jax.ShapeDtypeStruct((B, nsplit, C, 1), jnp.float32)),
        grid_spec=pltpu.PrefetchScalarGridSpec(
            num_scalar_prefetch=0,
            grid=(B, nsplit, ns),
            in_specs=[pl.BlockSpec((1, C, TL), in_map),
                      pl.BlockSpec((1, C, TL), in_map)],
            out_specs=[pl.BlockSpec((1, 1, C, 1), out_map),
                       pl.BlockSpec((1, 1, C, 1), out_map)],
        ),
        compiler_params=pltpu.CompilerParams(
            # batch + spatial-split parallel (shards across v7x's 2 TCs even at
            # B == 1); spatial reduction axis stays arbitrary.
            dimension_semantics=("parallel", "parallel", "arbitrary"),
            vmem_limit_bytes=int(vmem_limit),
        ),
    )(pred, tgt)

    # Tiny finalize in JAX: combine splits, L1, mean over C then over B.
    ps = jnp.sum(psum[..., 0], axis=1)          # (B, C)
    ts = jnp.sum(tsum[..., 0], axis=1)          # (B, C)
    return jnp.abs(ps - ts).mean(axis=1).mean(axis=0)


def _reference_loss(prediction, target, method, threshold=0.5,
                    sigmoid=False, softmax=True):
    """Pure-JAX reference of the same semantics, for a sanity check."""
    p = prediction.astype(jnp.float32)
    t = target.astype(jnp.float32)
    if softmax:
        p = jax.nn.softmax(p, axis=1)
    elif sigmoid:
        p = jax.nn.sigmoid(p)
    spatial = tuple(range(2, p.ndim))
    if method in (VolumeDifferenceMethod.THRESHOLD,
                  VolumeDifferenceMethod.WEIGHTED_THRESHOLDED):
        ps = jnp.where(p > threshold, p, 0.0).sum(axis=spatial)
    else:
        ps = p.sum(axis=spatial)
    if method in (VolumeDifferenceMethod.WEIGHTED,
                  VolumeDifferenceMethod.WEIGHTED_THRESHOLDED):
        ts = (t * p).sum(axis=spatial)
    else:
        ts = t.sum(axis=spatial)
    return jnp.abs(ps - ts).mean(axis=1).mean(axis=0)


if __name__ == "__main__":
    key = jax.random.PRNGKey(0)
    k1, k2, k3, k4, k5, k6 = jax.random.split(key, 6)

    # Case 1: default SUM + softmax, spatial size a multiple of 128 (no ragged tail).
    B, C, H, W = 2, 4, 16, 16
    pred1 = jax.random.normal(k1, (B, C, H, W), dtype=jnp.float32)
    tgt1 = (jax.random.uniform(k2, (B, C, H, W)) > 0.7).astype(jnp.float32)
    loss1 = jax.block_until_ready(volume_difference_loss(
        pred1, tgt1, method=VolumeDifferenceMethod.SUM))
    ref1 = _reference_loss(pred1, tgt1, VolumeDifferenceMethod.SUM)
    np.testing.assert_allclose(np.asarray(loss1), np.asarray(ref1),
                               rtol=1e-3, atol=1e-3)

    # Case 2: WEIGHTED_THRESHOLDED with odd spatial size (ragged last tile):
    # exercises in-kernel masking, thresholding and the weighted target path.
    B2, C2, H2, W2 = 2, 3, 13, 13
    pred2 = jax.random.normal(k3, (B2, C2, H2, W2), dtype=jnp.float32)
    tgt2 = (jax.random.uniform(k4, (B2, C2, H2, W2)) > 0.6).astype(jnp.float32)
    loss2 = jax.block_until_ready(volume_difference_loss(
        pred2, tgt2, method=VolumeDifferenceMethod.WEIGHTED_THRESHOLDED,
        threshold=0.3))
    ref2 = _reference_loss(pred2, tgt2, VolumeDifferenceMethod.WEIGHTED_THRESHOLDED,
                           threshold=0.3)
    np.testing.assert_allclose(np.asarray(loss2), np.asarray(ref2),
                               rtol=1e-3, atol=1e-3)

    # Case 3: B=1 3-D volume with a non-multiple-of-128 size and bf16 prediction
    # pass-through (no wrapper cast); exercises the spatial-split parallel axis.
    B3, C3 = 1, 4
    pred3 = jax.random.normal(k5, (B3, C3, 7, 9, 11),
                              dtype=jnp.float32).astype(jnp.bfloat16)
    tgt3 = (jax.random.uniform(k6, (B3, C3, 7, 9, 11)) > 0.5).astype(jnp.float32)
    loss3 = jax.block_until_ready(volume_difference_loss(
        pred3, tgt3, method=VolumeDifferenceMethod.WEIGHTED))
    ref3 = _reference_loss(pred3, tgt3, VolumeDifferenceMethod.WEIGHTED)
    np.testing.assert_allclose(np.asarray(loss3), np.asarray(ref3),
                               rtol=2e-3, atol=2e-3)

    print("KERNEL_OK")
</pallas_src>

<mosaic_0001>
module attributes {stable_mosaic.version = 11 : i64} {
  func.func @_vd_kernel(%arg0: i32, %arg1: i32, %arg2: i32, %arg3: memref<1x4x128xf32, #tpu.memory_space<vmem>>, %arg4: memref<1x4x128xf32, #tpu.memory_space<vmem>>, %arg5: memref<1x1x4x1xf32, #tpu.memory_space<vmem>>, %arg6: memref<1x1x4x1xf32, #tpu.memory_space<vmem>>) attributes {dimension_semantics = [#tpu.dimension_semantics<parallel>, #tpu.dimension_semantics<parallel>, #tpu.dimension_semantics<arbitrary>], iteration_bounds = array<i64: 2, 2, 1>, scalar_prefetch = 0 : i64, scratch_operands = 0 : i64, tpu.core_type = #tpu.core_type<tc>, window_params = [{transform_indices = @transform_0, window_bounds = array<i64: 1, 4, 128>}, {transform_indices = @transform_1, window_bounds = array<i64: 1, 4, 128>}, {transform_indices = @transform_2, window_bounds = array<i64: 1, 1, 4, 1>}, {transform_indices = @transform_3, window_bounds = array<i64: 1, 1, 4, 1>}]} {
    %c0_i32 = arith.constant 0 : i32
    %0 = arith.cmpi eq, %arg2, %c0_i32 : i32
    %1 = arith.extui %0 : i1 to i32
    %c0_i32_0 = arith.constant 0 : i32
    %2 = arith.cmpi ne, %1, %c0_i32_0 : i32
    scf.if %2 {
      %cst_26 = arith.constant 0.000000e+00 : f32
      %30 = vector.broadcast %cst_26 : f32 to vector<1x1x4x1xf32>
      %c0_27 = arith.constant 0 : index
      %c0_28 = arith.constant 0 : index
      %c0_29 = arith.constant 0 : index
      %c0_30 = arith.constant 0 : index
      %31 = vector.load %arg5[%c0_27, %c0_28, %c0_29, %c0_30] : memref<1x1x4x1xf32, #tpu.memory_space<vmem>>, vector<1x1x4x1xf32>
      tpu.vector_store %arg5[%c0_27, %c0_28, %c0_29, %c0_30], %30 {strides = array<i32>} : memref<1x1x4x1xf32, #tpu.memory_space<vmem>>, vector<1x1x4x1xf32>,
      %cst_31 = arith.constant 0.000000e+00 : f32
      %32 = vector.broadcast %cst_31 : f32 to vector<1x1x4x1xf32>
      %c0_32 = arith.constant 0 : index
      %c0_33 = arith.constant 0 : index
      %c0_34 = arith.constant 0 : index
      %c0_35 = arith.constant 0 : index
      %33 = vector.load %arg6[%c0_32, %c0_33, %c0_34, %c0_35] : memref<1x1x4x1xf32, #tpu.memory_space<vmem>>, vector<1x1x4x1xf32>
      tpu.vector_store %arg6[%c0_32, %c0_33, %c0_34, %c0_35], %32 {strides = array<i32>} : memref<1x1x4x1xf32, #tpu.memory_space<vmem>>, vector<1x1x4x1xf32>,
    } else {
    }
    %c0 = arith.constant 0 : index
    %c0_1 = arith.constant 0 : index
    %c0_2 = arith.constant 0 : index
    %3 = vector.load %arg3[%c0, %c0_1, %c0_2] : memref<1x4x128xf32, #tpu.memory_space<vmem>>, vector<1x4x128xf32>
    %4 = vector.shape_cast %3 : vector<1x4x128xf32> to vector<4x128xf32>
    %c0_3 = arith.constant 0 : index
    %c0_4 = arith.constant 0 : index
    %c0_5 = arith.constant 0 : index
    %5 = vector.load %arg4[%c0_3, %c0_4, %c0_5] : memref<1x4x128xf32, #tpu.memory_space<vmem>>, vector<1x4x128xf32>
    %6 = vector.shape_cast %5 : vector<1x4x128xf32> to vector<4x128xf32>
    %cst = arith.constant dense<0xFF800000> : vector<128xf32>
    %7 = vector.multi_reduction <maximumf>, %4, %cst [0] : vector<4x128xf32> to vector<128xf32>
    %8 = vector.shape_cast %7 : vector<128xf32> to vector<1x128xf32>
    %9 = vector.broadcast %8 : vector<1x128xf32> to vector<4x128xf32>
    %10 = arith.subf %4, %9 : vector<4x128xf32>
    %11 = math.exp %10 : vector<4x128xf32>
    %cst_6 = arith.constant dense<0.000000e+00> : vector<128xf32>
    %12 = vector.multi_reduction <add>, %11, %cst_6 [0] : vector<4x128xf32> to vector<128xf32>
    %13 = vector.shape_cast %12 : vector<128xf32> to vector<1x128xf32>
    %cst_7 = arith.constant 1.000000e+00 : f32
    %14 = vector.broadcast %cst_7 : f32 to vector<1x128xf32>
    %15 = arith.divf %14, %13 : vector<1x128xf32>
    %16 = vector.broadcast %15 : vector<1x128xf32> to vector<4x128xf32>
    %17 = arith.mulf %11, %16 : vector<4x128xf32>
    %c0_8 = arith.constant 0 : index
    %c0_9 = arith.constant 0 : index
    %c0_10 = arith.constant 0 : index
    %c0_11 = arith.constant 0 : index
    %18 = vector.load %arg5[%c0_8, %c0_9, %c0_10, %c0_11] : memref<1x1x4x1xf32, #tpu.memory_space<vmem>>, vector<1x1x4x1xf32>
    %cst_12 = arith.constant dense<0.000000e+00> : vector<4xf32>
    %19 = vector.multi_reduction <add>, %17, %cst_12 [1] : vector<4x128xf32> to vector<4xf32>
    %20 = vector.shape_cast %19 : vector<4xf32> to vector<4x1xf32>
    %21 = vector.shape_cast %20 : vector<4x1xf32> to vector<1x1x4x1xf32>
    %22 = arith.addf %18, %21 : vector<1x1x4x1xf32>
    %c0_13 = arith.constant 0 : index
    %c0_14 = arith.constant 0 : index
    %c0_15 = arith.constant 0 : index
    %c0_16 = arith.constant 0 : index
    %23 = vector.load %arg5[%c0_13, %c0_14, %c0_15, %c0_16] : memref<1x1x4x1xf32, #tpu.memory_space<vmem>>, vector<1x1x4x1xf32>
    tpu.vector_store %arg5[%c0_13, %c0_14, %c0_15, %c0_16], %22 {strides = array<i32>} : memref<1x1x4x1xf32, #tpu.memory_space<vmem>>, vector<1x1x4x1xf32>,
    %c0_17 = arith.constant 0 : index
    %c0_18 = arith.constant 0 : index
    %c0_19 = arith.constant 0 : index
    %c0_20 = arith.constant 0 : index
    %24 = vector.load %arg6[%c0_17, %c0_18, %c0_19, %c0_20] : memref<1x1x4x1xf32, #tpu.memory_space<vmem>>, vector<1x1x4x1xf32>
    %cst_21 = arith.constant dense<0.000000e+00> : vector<4xf32>
    %25 = vector.multi_reduction <add>, %6, %cst_21 [1] : vector<4x128xf32> to vector<4xf32>
    %26 = vector.shape_cast %25 : vector<4xf32> to vector<4x1xf32>
    %27 = vector.shape_cast %26 : vector<4x1xf32> to vector<1x1x4x1xf32>
    %28 = arith.addf %24, %27 : vector<1x1x4x1xf32>
    %c0_22 = arith.constant 0 : index
    %c0_23 = arith.constant 0 : index
    %c0_24 = arith.constant 0 : index
    %c0_25 = arith.constant 0 : index
    %29 = vector.load %arg6[%c0_22, %c0_23, %c0_24, %c0_25] : memref<1x1x4x1xf32, #tpu.memory_space<vmem>>, vector<1x1x4x1xf32>
    tpu.vector_store %arg6[%c0_22, %c0_23, %c0_24, %c0_25], %28 {strides = array<i32>} : memref<1x1x4x1xf32, #tpu.memory_space<vmem>>, vector<1x1x4x1xf32>,
    return
  }
  func.func @transform_0(%arg0: i32, %arg1: i32, %arg2: i32) -> (i32, i32, i32) {
    %c1_i32 = arith.constant 1 : i32
    %0 = arith.muli %arg1, %c1_i32 : i32
    %1 = arith.addi %0, %arg2 : i32
    %c0_i32 = arith.constant 0 : i32
    %c0_i32_0 = arith.constant 0 : i32
    return %arg0, %c0_i32, %1 : i32, i32, i32
  }
  func.func @transform_1(%arg0: i32, %arg1: i32, %arg2: i32) -> (i32, i32, i32) {
    %c1_i32 = arith.constant 1 : i32
    %0 = arith.muli %arg1, %c1_i32 : i32
    %1 = arith.addi %0, %arg2 : i32
    %c0_i32 = arith.constant 0 : i32
    %c0_i32_0 = arith.constant 0 : i32
    return %arg0, %c0_i32, %1 : i32, i32, i32
  }
  func.func @transform_2(%arg0: i32, %arg1: i32, %arg2: i32) -> (i32, i32, i32, i32) {
    %c0_i32 = arith.constant 0 : i32
    %c0_i32_0 = arith.constant 0 : i32
    %c0_i32_1 = arith.constant 0 : i32
    return %arg0, %arg1, %c0_i32, %c0_i32_0 : i32, i32, i32, i32
  }
  func.func @transform_3(%arg0: i32, %arg1: i32, %arg2: i32) -> (i32, i32, i32, i32) {
    %c0_i32 = arith.constant 0 : i32
    %c0_i32_0 = arith.constant 0 : i32
    %c0_i32_1 = arith.constant 0 : i32
    return %arg0, %arg1, %c0_i32, %c0_i32_0 : i32, i32, i32, i32
  }
}

</mosaic_0001>

<llo_original>
// kernel: tpu_custom_call.1
$region0: #{tpu_custom_call.1}
  #allocation0 [shape = 'u32[]', space=smem, size = 0x4, offset = 0x4, fixed_abs, tag = 'smem constant byte address 0x4 - core index']
  #allocation1 [shape = 'u32[144,128]{1,0:T(1,128)}', space=vmem, size = 0x12000, scoped, tag = 'internal scratch']
  %s0 = inlined_call_operand.hbm [shape: f32[2,4,256], index: 0, kind: input, shape index: {}]
  %s1 = inlined_call_operand.hbm [shape: f32[2,4,256], index: 1, kind: input, shape index: {}]
  %s2 = inlined_call_operand.vmem [shape: f32[2,2,4,1], index: 2, kind: output, shape index: {0}]
  %s3 = inlined_call_operand.vmem [shape: f32[2,2,4,1], index: 3, kind: output, shape index: {1}]
  %4 = xla_tuple %s2, %s3
  %s5 = sld [smem:[#allocation0]]
  $region61: #{tpu_custom_call.1} parent=0
    _
  %s7 = ssub.s32 1, %s5
  %s8 = scalar_select 0, %s7, %s5
  $region1: #{tpu_custom_call.1} parent=0
    #allocation2 [shape = 'u8[4096]{0}', space=vmem, size = 0x1000, scoped, tag = 'input window, operand 0']
    #allocation3 [shape = 's32[2]{0}', space=sflag, size = 0x8, scoped, tag = 'scoped memory for tpu_custom_call.1']
    #allocation4 [shape = 'u8[4096]{0}', space=vmem, size = 0x1000, scoped, tag = 'input window, operand 1']
    #allocation5 [shape = 's32[2]{0}', space=sflag, size = 0x8, scoped, tag = 'scoped memory for tpu_custom_call.1']
    %9 = vsyncpa [#allocation3], 0
    %s10 = scalar_lea.sflag [#allocation3], 1
    %11 = vsyncpa %s10, 0
    %12 = vsyncpa [#allocation5], 0
    %s13 = scalar_lea.sflag [#allocation5], 1
    %14 = vsyncpa %s13, 0
    loop: start=0, step=1, limit=6
    $region2: #{tpu_custom_call.1} parent=1 // loop_pre_header
      _
    $region3: #{tpu_custom_call.1} parent=1 // loop_header
      %s16 = sphi 0, %s20
      %p17 = scmp.ge.s32.totalorder %s16, 6
      %s23 = sphi 0, %s42
      %s24 = sphi 0, %s38
      %s25 = sphi 0, %s34
      %s26 = sphi 0, %s23
      %s27 = sphi 0, %s24
      %s28 = sphi 0, %s25
      %s29 = sphi 0, %s26
      %s30 = sphi 0, %s27
      %s31 = sphi 0, %s28
      %s49 = sphi 0, %s51
      %s52 = sphi 0, %s49
      %s53 = sphi 0, %s52
      %s69 = sphi 0, %s53
      %s79 = sphi 0, %s81
      %s82 = sphi 0, %s79
      %s83 = sphi 0, %s82
      %s99 = sphi 0, %s83
      %s107 = sphi 0, %s109
      %s110 = sphi 0, %s107
      %s111 = sphi 0, %s110
      %s127 = sphi 0, %s111
      %s135 = sphi 0, %s137
      %s138 = sphi 0, %s135
      %s139 = sphi 0, %s138
      %s155 = sphi 0, %s139
    $region4: #{tpu_custom_call.1} parent=1 // loop_header_branch
      %19 = sbr.rel (%p17) target = $region8
    $region5: #{tpu_custom_call.1} parent=1 // loop_body
      %s21 = ssub.s32 %s16, 1
      %s22 = ssub.s32 %s16, 2
      %s32 = sadd.s32 1, %s25
      %p33 = scmp.ge.s32.totalorder %s32, 1
      %s34 = scalar_select %p33, 0, %s32
      %s35 = sadd.s32 1, %s24
      %s36 = scalar_select %p33, %s35, %s24
      %p37 = scmp.ge.s32.totalorder %s36, 2
      %s38 = scalar_select %p37, 0, %s36
      %s39 = sadd.s32 1, %s23
      %s40 = scalar_select %p37, %s39, %s23
      %p41 = scmp.ge.s32.totalorder %s40, 2
      %s42 = scalar_select %p41, 0, %s40
      %s43 = sadd.s32 %s24, %s25
      %s44 = sadd.s32 %s38, %s34
      %s45 = ssub.s32 %s23, %s42
      %s46 = ssub.s32 %s43, %s44
      %s47 = sor.u32 %s45, %s46
      %p48 = scmp.eq.s32.totalorder %s47, 0
      %s50 = sadd.s32 %s49, 1
      %s51 = scalar_select %p48, %s49, %s50
      %p54 = pneg %p48
      %p55 = scmp.eq.s32.totalorder %s16, 3
      %p56 = por %p54, %p55
      %p57 = scmp.ne.s32.totalorder %s49, %s52
      %p58 = scmp.eq.s32.totalorder %s16, 0
      %p59 = por %p57, %p58
      %p60 = scmp.ne.s32.totalorder %s49, %s52
      %p61 = scmp.eq.s32.totalorder %s21, 3
      %p62 = por %p60, %p61
      %p63 = scmp.ne.s32.totalorder %s52, %s53
      %p64 = scmp.eq.s32.totalorder %s21, 0
      %p65 = por %p63, %p64
      %p66 = scmp.ne.s32.totalorder %s52, %s53
      %p67 = scmp.eq.s32.totalorder %s22, 3
      %p68 = por %p66, %p67
      %p70 = scmp.ne.s32.totalorder %s53, %s69
      %p71 = scmp.eq.s32.totalorder %s22, 0
      %p72 = por %p70, %p71
      %s73 = sadd.s32 %s24, %s25
      %s74 = sadd.s32 %s38, %s34
      %s75 = ssub.s32 %s23, %s42
      %s76 = ssub.s32 %s73, %s74
      %s77 = sor.u32 %s75, %s76
      %p78 = scmp.eq.s32.totalorder %s77, 0
      %s80 = sadd.s32 %s79, 1
      %s81 = scalar_select %p78, %s79, %s80
      %p84 = pneg %p78
      %p85 = scmp.eq.s32.totalorder %s16, 3
      %p86 = por %p84, %p85
      %p87 = scmp.ne.s32.totalorder %s79, %s82
      %p88 = scmp.eq.s32.totalorder %s16, 0
      %p89 = por %p87, %p88
      %p90 = scmp.ne.s32.totalorder %s79, %s82
      %p91 = scmp.eq.s32.totalorder %s21, 3
      %p92 = por %p90, %p91
      %p93 = scmp.ne.s32.totalorder %s82, %s83
      %p94 = scmp.eq.s32.totalorder %s21, 0
      %p95 = por %p93, %p94
      %p96 = scmp.ne.s32.totalorder %s82, %s83
      %p97 = scmp.eq.s32.totalorder %s22, 3
      %p98 = por %p96, %p97
      %p100 = scmp.ne.s32.totalorder %s83, %s99
      %p101 = scmp.eq.s32.totalorder %s22, 0
      %p102 = por %p100, %p101
      %s103 = ssub.s32 %s23, %s42
      %s104 = ssub.s32 %s24, %s38
      %s105 = sor.u32 %s103, %s104
      %p106 = scmp.eq.s32.totalorder %s105, 0
      %s108 = sadd.s32 %s107, 1
      %s109 = scalar_select %p106, %s107, %s108
      %p112 = pneg %p106
      %p113 = scmp.eq.s32.totalorder %s16, 3
      %p114 = por %p112, %p113
      %p115 = scmp.ne.s32.totalorder %s107, %s110
      %p116 = scmp.eq.s32.totalorder %s16, 0
      %p117 = por %p115, %p116
      %p118 = scmp.ne.s32.totalorder %s107, %s110
      %p119 = scmp.eq.s32.totalorder %s21, 3
      %p120 = por %p118, %p119
      %p121 = scmp.ne.s32.totalorder %s110, %s111
      %p122 = scmp.eq.s32.totalorder %s21, 0
      %p123 = por %p121, %p122
      %p124 = scmp.ne.s32.totalorder %s110, %s111
      %p125 = scmp.eq.s32.totalorder %s22, 3
      %p126 = por %p124, %p125
      %p128 = scmp.ne.s32.totalorder %s111, %s127
      %p129 = scmp.eq.s32.totalorder %s22, 0
      %p130 = por %p128, %p129
      %s131 = ssub.s32 %s23, %s42
      %s132 = ssub.s32 %s24, %s38
      %s133 = sor.u32 %s131, %s132
      %p134 = scmp.eq.s32.totalorder %s133, 0
      %s136 = sadd.s32 %s135, 1
      %s137 = scalar_select %p134, %s135, %s136
      %p140 = pneg %p134
      %p141 = scmp.eq.s32.totalorder %s16, 3
      %p142 = por %p140, %p141
      %p143 = scmp.ne.s32.totalorder %s135, %s138
      %p144 = scmp.eq.s32.totalorder %s16, 0
      %p145 = por %p143, %p144
      %p146 = scmp.ne.s32.totalorder %s135, %s138
      %p147 = scmp.eq.s32.totalorder %s21, 3
      %p148 = por %p146, %p147
      %p149 = scmp.ne.s32.totalorder %s138, %s139
      %p150 = scmp.eq.s32.totalorder %s21, 0
      %p151 = por %p149, %p150
      %p152 = scmp.ne.s32.totalorder %s138, %s139
      %p153 = scmp.eq.s32.totalorder %s22, 3
      %p154 = por %p152, %p153
      %p156 = scmp.ne.s32.totalorder %s139, %s155
      %p157 = scmp.eq.s32.totalorder %s22, 0
      %p158 = por %p156, %p157
      %p159 = scmp.le.s32.totalorder 1, %s16
      %p160 = scmp.lt.s32.totalorder %s16, 5
      %p161 = pnand %p159, %p160
      %p162 = pneg %p161
      // Predicated region
      $region9: #{tpu_custom_call.1} parent=5 // pred_check
        _
      $region10: #{tpu_custom_call.1} parent=5 // pred_check_branch
        %164 = sbr.rel (%p161) target = $region12
      $region11: #{tpu_custom_call.1} parent=5 // pred_region
        %s165 = ssub.s32 %s16, 1
      $region12: #{tpu_custom_call.1} parent=5 // pred_fallthru
        _
      %p166 = scmp.lt.s32.totalorder %s16, 4
      // Predicated region
      $region13: #{tpu_custom_call.1} parent=5 // pred_check
        %p167 = pneg %p166
      $region14: #{tpu_custom_call.1} parent=5 // pred_check_branch
        %169 = sbr.rel (%p167) target = $region16
      $region15: #{tpu_custom_call.1} parent=5 // pred_region
        // Predicated region
        $region17: #{tpu_custom_call.1} parent=15 // pred_check
          %p170 = pneg %p59
        $region18: #{tpu_custom_call.1} parent=15 // pred_check_branch
          %172 = sbr.rel (%p170) target = $region20
        $region19: #{tpu_custom_call.1} parent=15 // pred_region
          %s173 = sand.u32 %s49, 1
          %s174 = scalar_lea.sflag [#allocation3], %s173
          %s175 = sand.u32 %s49, 1
          %s176 = smul.addr %s175, 4
          %s177 = scalar_lea.vmem [#allocation2], %s176
          %s178 = sadd.s32 %s24, %s25
          %s180 = ssub.s32 64, 64
          %181 = vsyncadd %s174, %s180
          %s182 = smul.addr %s23, 2
          %s183 = sadd.s32 %s178, %s182
          %s184 = smul.addr %s183, 64
          %s185 = scalar_lea.hbm %s0, %s184
          %s187 = sshll.u32 %s177, 4
          %s188 = int_to_ptr.vmem [resolvable:$true] %s187
          %190 = dma.hbm_to_vmem [thread:$0]  %s185, 64, %s188, %s174
        $region20: #{tpu_custom_call.1} parent=15 // pred_fallthru
          _
        // Predicated region
        $region21: #{tpu_custom_call.1} parent=15 // pred_check
          %p191 = pneg %p89
        $region22: #{tpu_custom_call.1} parent=15 // pred_check_branch
          %193 = sbr.rel (%p191) target = $region24
        $region23: #{tpu_custom_call.1} parent=15 // pred_region
          %s194 = sand.u32 %s79, 1
          %s195 = scalar_lea.sflag [#allocation5], %s194
          %s196 = sand.u32 %s79, 1
          %s197 = smul.addr %s196, 4
          %s198 = scalar_lea.vmem [#allocation4], %s197
          %s199 = sadd.s32 %s24, %s25
          %s201 = ssub.s32 64, 64
          %202 = vsyncadd %s195, %s201
          %s203 = smul.addr %s23, 2
          %s204 = sadd.s32 %s199, %s203
          %s205 = smul.addr %s204, 64
          %s206 = scalar_lea.hbm %s1, %s205
          %s208 = sshll.u32 %s198, 4
          %s209 = int_to_ptr.vmem [resolvable:$true] %s208
          %211 = dma.hbm_to_vmem [thread:$0]  %s206, 64, %s209, %s195
        $region24: #{tpu_custom_call.1} parent=15 // pred_fallthru
          _
      $region16: #{tpu_custom_call.1} parent=5 // pred_fallthru
        _
      %p212 = scmp.le.s32.totalorder 1, %s16
      %p213 = scmp.lt.s32.totalorder %s16, 5
      %p214 = pnand %p212, %p213
      %p215 = pneg %p214
      // Predicated region
      $region25: #{tpu_custom_call.1} parent=5 // pred_check
        _
      $region26: #{tpu_custom_call.1} parent=5 // pred_check_branch
        %217 = sbr.rel (%p214) target = $region28
      $region27: #{tpu_custom_call.1} parent=5 // pred_region
        %s218 = ssub.s32 %s16, 1
        %s219 = sand.u32 %s52, 1
        %s220 = scalar_lea.sflag [#allocation3], %s219
        %s221 = sand.u32 %s52, 1
        %s222 = smul.addr %s221, 4
        %s223 = scalar_lea.vmem [#allocation2], %s222
        // Predicated region
        $region29: #{tpu_custom_call.1} parent=27 // pred_check
          %p224 = pneg %p65
        $region30: #{tpu_custom_call.1} parent=27 // pred_check_branch
          %226 = sbr.rel (%p224) target = $region32
        $region31: #{tpu_custom_call.1} parent=27 // pred_region
          %227 = dma.done %s220, 64
        $region32: #{tpu_custom_call.1} parent=27 // pred_fallthru
          _
        %s228 = sand.u32 %s82, 1
        %s229 = scalar_lea.sflag [#allocation5], %s228
        %s230 = sand.u32 %s82, 1
        %s231 = smul.addr %s230, 4
        %s232 = scalar_lea.vmem [#allocation4], %s231
        // Predicated region
        $region33: #{tpu_custom_call.1} parent=27 // pred_check
          %p233 = pneg %p95
        $region34: #{tpu_custom_call.1} parent=27 // pred_check_branch
          %235 = sbr.rel (%p233) target = $region36
        $region35: #{tpu_custom_call.1} parent=27 // pred_region
          %236 = dma.done %s229, 64
        $region36: #{tpu_custom_call.1} parent=27 // pred_fallthru
          _
        %s237 = sand.u32 %s52, 1
        %s238 = scalar_lea.sflag [#allocation3], %s237
        %s239 = sand.u32 %s52, 1
        %s240 = smul.addr %s239, 4
        %s241 = scalar_lea.vmem [#allocation2], %s240
        %p242 = pneg %p65
        %p243 = pneg %p62
        %s244 = sand.u32 %s82, 1
        %s245 = scalar_lea.sflag [#allocation5], %s244
        %s246 = sand.u32 %s82, 1
        %s247 = smul.addr %s246, 4
        %s248 = scalar_lea.vmem [#allocation4], %s247
        %p249 = pneg %p95
        %p250 = pneg %p92
        %p251 = pneg %p123
        %p252 = pneg %p120
        %p253 = scmp.lt.s32.totalorder %s26, 1
        %s254 = scalar_select %p253, %s26, 1
        %p255 = scmp.lt.s32.totalorder %s27, 1
        %s256 = scalar_select %p255, %s27, 1
        %s257 = smul.addr %s254, 2
        %s258 = sadd.s32 %s256, %s257
        %s259 = smul.addr %s258, 4
        %s260 = scalar_lea.vmem %s2, %s259
        %p261 = pneg %p151
        %p262 = pneg %p148
        %p263 = scmp.lt.s32.totalorder %s26, 1
        %s264 = scalar_select %p263, %s26, 1
        %p265 = scmp.lt.s32.totalorder %s27, 1
        %s266 = scalar_select %p265, %s27, 1
        %s267 = smul.addr %s264, 2
        %s268 = sadd.s32 %s266, %s267
        %s269 = smul.addr %s268, 4
        %s270 = scalar_lea.vmem %s3, %s269
        %s271 = sadd.s32 %s27, %s28
        %s272 = sadd.s32 %s27, %s28
        %p273 = scmp.lt.s32.totalorder %s26, 1
        %s274 = scalar_select %p273, %s26, 1
        %p275 = scmp.lt.s32.totalorder %s27, 1
        %s276 = scalar_select %p275, %s27, 1
        %s277 = smul.addr %s274, 2
        %s278 = sadd.s32 %s276, %s277
        %s279 = smul.addr %s278, 4
        %s280 = scalar_lea.vmem %s2, %s279
        %p281 = scmp.lt.s32.totalorder %s26, 1
        %s282 = scalar_select %p281, %s26, 1
        %p283 = scmp.lt.s32.totalorder %s27, 1
        %s284 = scalar_select %p283, %s27, 1
        %s285 = smul.addr %s282, 2
        %s286 = sadd.s32 %s284, %s285
        %s287 = smul.addr %s286, 4
        %s288 = scalar_lea.vmem %s3, %s287
        %p289 = scmp.eq.s32.totalorder %s28, 0
        // Predicated region
        $region37: #{tpu_custom_call.1} parent=27 // pred_check
          %p290 = pneg %p289
        $region38: #{tpu_custom_call.1} parent=27 // pred_check_branch
          %292 = sbr.rel (%p290) target = $region40
        $region39: #{tpu_custom_call.1} parent=27 // pred_region
          %vm293 = vcmask 3072
          %294 = vst.msk [vmem:[%s280] sm:$0xf] %vm293, 0.0
          %295 = vst.msk [vmem:[%s288] sm:$0xf] %vm293, 0.0
        $region40: #{tpu_custom_call.1} parent=27 // pred_fallthru
          _
        %v296 = vld [vmem:[%s223] sm:$0xf]
        %v297 = vld [vmem:[%s232] sm:$0xf]
        %vm298 = vcmask 1043456
        %v299 = vsel %vm298, %v296, -inf
        %v300 = vrot.slane %v299, 4
        %v301 = vmax.f32 %v299, %v300
        %v302 = vrot.slane %v301, 2
        %v303 = vmax.f32 %v301, %v302
        %v304 = vrot.slane %v303, 1
        %v305 = vmax.f32 %v303, %v304
        %v306 = vsub.f32 %v296, %v305
        %v307 = vmul.f32 %v306, 1.442695
        %v308 = vpow.pop %v307
        %v309 = vsel %vm298, %v308, 0.0
        %v310 = vrot.slane %v309, 4
        %v311 = vadd.f32 %v309, %v310
        %v312 = vrot.slane %v311, 2
        %v313 = vadd.f32 %v311, %v312
        %v314 = vrot.slane %v313, 1
        %v315 = vadd.f32 %v313, %v314
        %v316 = vrcp.pop %v315
        %v317 = vmul.f32 1.0, %v316
        %v318 = vmul.f32 %v308, %v317
        %v319 = vld [vmem:[%s280] sm:$0xf]
        %v320 = vsel %vm298, %v318, 0.0
        %321 = vadd.xlane.f32.xlu0 %v320
        %v322 = vpop.xlane.xlu0 %321
        %v323 = vadd.f32 %v319, %v322
        %vm324 = vcmask 3072
        %325 = vst.msk [vmem:[%s280] sm:$0xf] %vm324, %v323
        %v326 = vld [vmem:[%s288] sm:$0xf]
        %v327 = vsel %vm298, %v297, 0.0
        %328 = vadd.xlane.f32.xlu0 %v327
        %v329 = vpop.xlane.xlu0 %328
        %v330 = vadd.f32 %v326, %v329
        %331 = vst.msk [vmem:[%s288] sm:$0xf] %vm324, %v330
        %p332 = scmp.lt.s32.totalorder %s26, 1
        %s333 = scalar_select %p332, %s26, 1
        %p334 = scmp.lt.s32.totalorder %s27, 1
        %s335 = scalar_select %p334, %s27, 1
        %s336 = smul.addr %s333, 2
        %s337 = sadd.s32 %s335, %s336
        %s338 = smul.addr %s337, 4
        %s339 = scalar_lea.vmem %s2, %s338
        %p340 = scmp.lt.s32.totalorder %s26, 1
        %s341 = scalar_select %p340, %s26, 1
        %p342 = scmp.lt.s32.totalorder %s27, 1
        %s343 = scalar_select %p342, %s27, 1
        %s344 = smul.addr %s341, 2
        %s345 = sadd.s32 %s343, %s344
        %s346 = smul.addr %s345, 4
        %s347 = scalar_lea.vmem %s3, %s346
        // Predicated region
        $region41: #{tpu_custom_call.1} parent=27 // pred_check
          %p348 = pneg %p120
        $region42: #{tpu_custom_call.1} parent=27 // pred_check_branch
          %350 = sbr.rel (%p348) target = $region44
        $region43: #{tpu_custom_call.1} parent=27 // pred_region
          _
        $region44: #{tpu_custom_call.1} parent=27 // pred_fallthru
          _
        // Predicated region
        $region45: #{tpu_custom_call.1} parent=27 // pred_check
          %p351 = pneg %p148
        $region46: #{tpu_custom_call.1} parent=27 // pred_check_branch
          %353 = sbr.rel (%p351) target = $region48
        $region47: #{tpu_custom_call.1} parent=27 // pred_region
          _
        $region48: #{tpu_custom_call.1} parent=27 // pred_fallthru
          _
      $region28: #{tpu_custom_call.1} parent=5 // pred_fallthru
        _
      %p354 = scmp.le.s32.totalorder 2, %s16
      // Predicated region
      $region49: #{tpu_custom_call.1} parent=5 // pred_check
        %p355 = pneg %p354
      $region50: #{tpu_custom_call.1} parent=5 // pred_check_branch
        %357 = sbr.rel (%p355) target = $region52
      $region51: #{tpu_custom_call.1} parent=5 // pred_region
        %s358 = ssub.s32 %s16, 2
        // Predicated region
        $region53: #{tpu_custom_call.1} parent=51 // pred_check
          %p359 = pneg %p126
        $region54: #{tpu_custom_call.1} parent=51 // pred_check_branch
          %361 = sbr.rel (%p359) target = $region56
        $region55: #{tpu_custom_call.1} parent=51 // pred_region
          %p362 = scmp.lt.s32.totalorder %s29, 1
          %s363 = scalar_select %p362, %s29, 1
          %p364 = scmp.lt.s32.totalorder %s30, 1
          %s365 = scalar_select %p364, %s30, 1
          %s366 = smul.addr %s363, 2
          %s367 = sadd.s32 %s365, %s366
          %s368 = smul.addr %s367, 4
          %s369 = scalar_lea.vmem %s2, %s368
        $region56: #{tpu_custom_call.1} parent=51 // pred_fallthru
          _
        // Predicated region
        $region57: #{tpu_custom_call.1} parent=51 // pred_check
          %p370 = pneg %p154
        $region58: #{tpu_custom_call.1} parent=51 // pred_check_branch
          %372 = sbr.rel (%p370) target = $region60
        $region59: #{tpu_custom_call.1} parent=51 // pred_region
          %p373 = scmp.lt.s32.totalorder %s29, 1
          %s374 = scalar_select %p373, %s29, 1
          %p375 = scmp.lt.s32.totalorder %s30, 1
          %s376 = scalar_select %p375, %s30, 1
          %s377 = smul.addr %s374, 2
          %s378 = sadd.s32 %s376, %s377
          %s379 = smul.addr %s378, 4
          %s380 = scalar_lea.vmem %s3, %s379
        $region60: #{tpu_custom_call.1} parent=51 // pred_fallthru
          _
      $region52: #{tpu_custom_call.1} parent=5 // pred_fallthru
        _
    $region6: #{tpu_custom_call.1} parent=1 // loop_footer
      %s20 = sadd.s32 1, %s16
    $region7: #{tpu_custom_call.1} parent=1 // loop_footer_branch
      %15 = sbr.rel target = $region3
    $region8: #{tpu_custom_call.1} parent=1 // loop_exit
      _
    %381 = vsyncpa [#allocation3], 1
    %s382 = scalar_lea.sflag [#allocation3], 1
    %383 = vsyncpa %s382, 1
    %384 = vsyncpa [#allocation5], 1
    %s385 = scalar_lea.sflag [#allocation5], 1
    %386 = vsyncpa %s385, 1

</llo_original>
